<compile_context>
chip_gen: v5e
topology: v5e:2x2
jax: 0.10.0
libtpu: 0.0.40
codegen_flags: <defaults>
</compile_context>

<pallas_src>
import functools

import jax
import jax.numpy as jnp
from jax.experimental import pallas as pl
from jax.experimental.pallas import tpu as pltpu

LANE = 128      # vreg lane width
SUBLANE = 8     # vreg sublane count (f32)


def _round_up(x: int, m: int) -> int:
    return ((x + m - 1) // m) * m


def _vmem_ceiling_bytes() -> int:
    """Generation-aware VMEM limit ceiling with headroom."""
    cap = 128 << 20
    try:
        cap = int(pltpu.get_tpu_info().vmem_capacity_bytes)
    except Exception:
        pass
    if cap <= (64 << 20):                       # v7x-class: 64 MiB physical
        ceiling = cap - (8 << 20)               # ~56 MiB, headroom for x/out bufs
    else:                                       # v5e/v6e-class: 128 MiB physical
        ceiling = min(cap - (16 << 20), 110 << 20)
    return max(ceiling, 32 << 20)


# ----------------------------------------------------------------------------
# Kernel: whole MLP on one batch tile.
# refs = (x_ref, w0, b0, w1, b1, ..., w_{L-1}, b_{L-1}, o_ref)
# ----------------------------------------------------------------------------
def _mlp_fused_kernel(*refs, num_layers: int):
    x_ref = refs[0]
    o_ref = refs[1 + 2 * num_layers]

    h = x_ref[...]                                        # (tile, in_f), MXU dtype
    for l in range(num_layers):
        w_ref = refs[1 + 2 * l]
        b_ref = refs[2 + 2 * l]
        y = jnp.dot(h.astype(w_ref.dtype), w_ref[...],
                    preferred_element_type=jnp.float32)   # MXU, f32 accumulate
        y = y + b_ref[...]                                # VPU, f32
        if l < num_layers - 1:
            y = jnp.tanh(y)                               # EUP, f32 (v5e: no bf16 EUP)
        h = y
    o_ref[...] = h.astype(o_ref.dtype)


# ----------------------------------------------------------------------------
# Parameter handling
# ----------------------------------------------------------------------------
def init_mlp_params(key, input_size, hidden_sizes, output_size, dtype=jnp.float32):
    """Deterministic init mirroring nn.Linear's default U(-1/sqrt(fan_in), ...)."""
    sizes = [input_size] + list(hidden_sizes) + [output_size]
    params = []
    for i in range(len(sizes) - 1):
        fan_in, fan_out = sizes[i], sizes[i + 1]
        key, kw, kb = jax.random.split(key, 3)
        bound = 1.0 / (fan_in ** 0.5)
        w = jax.random.uniform(kw, (fan_in, fan_out), dtype, -bound, bound)
        b = jax.random.uniform(kb, (fan_out,), dtype, -bound, bound)
        params.append((w, b))
    return params


def pad_params(params, mxu_dtype=jnp.bfloat16):
    """Lane-pad output dims (and input dims of layers > 0); keep biases f32.

    Layer 0 keeps its input dim unpadded so the x HBM stream carries only
    useful bytes; zero padding elsewhere is numerically exact.
    """
    padded = []
    for li, (w, b) in enumerate(params):
        in_f, out_f = w.shape
        in_p = in_f if li == 0 else _round_up(in_f, LANE)
        out_p = _round_up(out_f, LANE)
        wp = jnp.zeros((in_p, out_p), mxu_dtype).at[:in_f, :out_f].set(
            w.astype(mxu_dtype))
        bp = jnp.zeros((1, out_p), jnp.float32).at[0, :out_f].set(
            b.astype(jnp.float32))
        padded.append((wp, bp))
    return padded


# ----------------------------------------------------------------------------
# Fused forward pass
# ----------------------------------------------------------------------------
def fused_mlp_forward(x, padded_params, *, batch_tile=None):
    """x: [batch, in_f] (unpadded features). padded_params: pad_params output."""
    batch, in_f = x.shape
    num_layers = len(padded_params)
    assert padded_params[0][0].shape[0] == in_f
    out_pad = padded_params[-1][0].shape[1]
    in_dtype = padded_params[0][0].dtype
    out_dtype = x.dtype

    if batch_tile is None:
        # Large tiles (up to 512) amortize per-step overhead and fill the MXU
        # M dim; keep >=4 grid steps when batch allows (>=2 tiles per TC on
        # v7x); never below 128 unless the batch itself is smaller.
        floor = min(128, _round_up(batch, SUBLANE))
        batch_tile = max(min(512, _round_up(pl.cdiv(batch, 4), SUBLANE)), floor)
    batch_pad = _round_up(max(batch, batch_tile), batch_tile)

    # Pad only the batch dim; cast x to the MXU dtype once in HBM.
    x_p = jnp.zeros((batch_pad, in_f), in_dtype).at[:batch, :].set(
        x.astype(in_dtype))

    grid = (batch_pad // batch_tile,)

    in_specs = [pl.BlockSpec((batch_tile, in_f), lambda i: (i, 0))]
    flat_params = []
    for w, b in padded_params:
        kin, kout = w.shape
        # Constant index_map => fetched once, resident across batch tiles.
        # Buffered(1): invariant operands don't need a second pipeline buffer.
        in_specs.append(pl.BlockSpec((kin, kout), lambda i: (0, 0),
                                     pipeline_mode=pl.Buffered(1)))
        in_specs.append(pl.BlockSpec((1, kout), lambda i: (0, 0),
                                     pipeline_mode=pl.Buffered(1)))
        flat_params += [w, b]

    # TODO(synk): for large batch with tiny out_f, benchmark an unpadded
    # out_spec (masked vst, 16x fewer HBM bytes) against this lane-padded one.
    out_specs = pl.BlockSpec((batch_tile, out_pad), lambda i: (i, 0))

    # Cost estimate (advisory) + VMEM accounting.
    in_itemsize = jnp.dtype(in_dtype).itemsize
    out_itemsize = jnp.dtype(out_dtype).itemsize
    flops = 0
    transcendentals = 0
    bytes_accessed = batch_pad * in_f * in_itemsize + batch_pad * out_pad * out_itemsize
    vmem_need = (2 * batch_tile * in_f * in_itemsize        # double-buffered x tiles
                 + 2 * batch_tile * out_pad * out_itemsize)  # double-buffered out tiles
    for li, (w, b) in enumerate(padded_params):
        kin, kout = w.shape
        flops += 2 * batch_pad * kin * kout
        if li < num_layers - 1:
            transcendentals += batch_pad * kout
        w_bytes = w.size * jnp.dtype(w.dtype).itemsize
        b_bytes = b.size * jnp.dtype(b.dtype).itemsize
        bytes_accessed += w_bytes + b_bytes
        vmem_need += w_bytes + b_bytes              # single-buffered residents
        vmem_need += batch_tile * kout * 4          # live f32 intermediate
    vmem_limit = int(min(max(int(1.5 * vmem_need), 32 << 20), _vmem_ceiling_bytes()))
    # TODO(synk): if resident weights exceed ~1/3 of the VMEM ceiling, add an
    # N/K grid axis ("arbitrary") with an f32 accumulator instead of full
    # weight residency (needed sooner on v7x's 64 MiB VMEM).

    kernel = functools.partial(_mlp_fused_kernel, num_layers=num_layers)

    out_padded = pl.pallas_call(
        kernel,
        out_shape=jax.ShapeDtypeStruct((batch_pad, out_pad), out_dtype),
        grid_spec=pltpu.PrefetchScalarGridSpec(
            num_scalar_prefetch=0,
            grid=grid,
            in_specs=in_specs,
            out_specs=out_specs,
        ),
        compiler_params=pltpu.CompilerParams(
            dimension_semantics=("parallel",),
            vmem_limit_bytes=vmem_limit,
        ),
        cost_estimate=pl.CostEstimate(
            flops=flops,
            transcendentals=transcendentals,
            bytes_accessed=bytes_accessed,
        ),
    )(x_p, *flat_params)

    return out_padded


def mlp_forward(params, x, *, batch_tile=None, mxu_dtype=jnp.bfloat16):
    """Hidden layers: Linear -> Tanh; output layer: Linear (no activation)."""
    out_f = params[-1][0].shape[1]
    padded = pad_params(params, mxu_dtype=mxu_dtype)
    out_p = fused_mlp_forward(x, padded, batch_tile=batch_tile)
    return out_p[: x.shape[0], :out_f]


def mlp_reference(params, x):
    for w, b in params[:-1]:
        x = jnp.tanh(x @ w + b)
    w, b = params[-1]
    return x @ w + b


if __name__ == "__main__":
    input_size = 16
    hidden_sizes = [32, 32]
    output_size = 8
    batch = 256  # -> batch_tile=128, grid=(2,): both v7x TensorCores get a tile

    key = jax.random.PRNGKey(0)
    key, kx = jax.random.split(key)
    x = jax.random.normal(kx, (batch, input_size), dtype=jnp.float32)
    params = init_mlp_params(key, input_size, hidden_sizes, output_size)

    ref = mlp_reference(params, x)

    # Default fast path: bf16 MXU operands, f32 accumulate / bias / tanh.
    out_bf16 = jax.block_until_ready(jax.jit(mlp_forward)(params, x))
    assert out_bf16.shape == (batch, output_size)
    assert jnp.allclose(out_bf16, ref, atol=5e-2, rtol=5e-2), float(
        jnp.max(jnp.abs(out_bf16 - ref)))

    # Exact f32 path for strict numerics validation.
    fwd_f32 = jax.jit(functools.partial(mlp_forward, mxu_dtype=jnp.float32))
    out_f32 = jax.block_until_ready(fwd_f32(params, x))
    assert jnp.allclose(out_f32, ref, atol=1e-5, rtol=1e-5)

    print("KERNEL_OK")
</pallas_src>

<mosaic_0001>
module attributes {stable_mosaic.version = 11 : i64} {
  func.func @_mlp_fused_kernel(%arg0: i32, %arg1: memref<128x16xbf16, #tpu.memory_space<vmem>>, %arg2: memref<16x128xbf16, #tpu.memory_space<vmem>>, %arg3: memref<1x128xf32, #tpu.memory_space<vmem>>, %arg4: memref<128x128xbf16, #tpu.memory_space<vmem>>, %arg5: memref<1x128xf32, #tpu.memory_space<vmem>>, %arg6: memref<128x128xbf16, #tpu.memory_space<vmem>>, %arg7: memref<1x128xf32, #tpu.memory_space<vmem>>, %arg8: memref<128x128xf32, #tpu.memory_space<vmem>>) attributes {dimension_semantics = [#tpu.dimension_semantics<parallel>], iteration_bounds = array<i64: 2>, scalar_prefetch = 0 : i64, scratch_operands = 0 : i64, tpu.core_type = #tpu.core_type<tc>, window_params = [{transform_indices = @transform_0, window_bounds = array<i64: 128, 16>}, {pipeline_mode = #tpu.pipeline_mode<synchronous>, transform_indices = @transform_1, window_bounds = array<i64: 16, 128>}, {pipeline_mode = #tpu.pipeline_mode<synchronous>, transform_indices = @transform_2, window_bounds = array<i64: 1, 128>}, {pipeline_mode = #tpu.pipeline_mode<synchronous>, transform_indices = @transform_3, window_bounds = array<i64: 128, 128>}, {pipeline_mode = #tpu.pipeline_mode<synchronous>, transform_indices = @transform_4, window_bounds = array<i64: 1, 128>}, {pipeline_mode = #tpu.pipeline_mode<synchronous>, transform_indices = @transform_5, window_bounds = array<i64: 128, 128>}, {pipeline_mode = #tpu.pipeline_mode<synchronous>, transform_indices = @transform_6, window_bounds = array<i64: 1, 128>}, {transform_indices = @transform_7, window_bounds = array<i64: 128, 128>}]} {
    %c0 = arith.constant 0 : index
    %c0_0 = arith.constant 0 : index
    %0 = vector.load %arg1[%c0, %c0_0] : memref<128x16xbf16, #tpu.memory_space<vmem>>, vector<128x16xbf16>
    %c0_1 = arith.constant 0 : index
    %c0_2 = arith.constant 0 : index
    %1 = vector.load %arg2[%c0_1, %c0_2] : memref<16x128xbf16, #tpu.memory_space<vmem>>, vector<16x128xbf16>
    %cst = arith.constant dense<0.000000e+00> : vector<128x128xf32>
    %2 = tpu.matmul %0, %1, %cst {dimension_numbers = #tpu.dot_dimension_numbers<[1], [0], [0], [1], [0, 0, 1, 1], [], []>} : vector<128x16xbf16>, vector<16x128xbf16>, vector<128x128xf32> -> vector<128x128xf32>
    %c0_3 = arith.constant 0 : index
    %c0_4 = arith.constant 0 : index
    %3 = vector.load %arg3[%c0_3, %c0_4] : memref<1x128xf32, #tpu.memory_space<vmem>>, vector<1x128xf32>
    %4 = vector.broadcast %3 : vector<1x128xf32> to vector<128x128xf32>
    %5 = arith.addf %2, %4 : vector<128x128xf32>
    %6 = math.tanh %5 : vector<128x128xf32>
    %7 = arith.truncf %6 : vector<128x128xf32> to vector<128x128xbf16>
    %c0_5 = arith.constant 0 : index
    %c0_6 = arith.constant 0 : index
    %8 = vector.load %arg4[%c0_5, %c0_6] : memref<128x128xbf16, #tpu.memory_space<vmem>>, vector<128x128xbf16>
    %cst_7 = arith.constant dense<0.000000e+00> : vector<128x128xf32>
    %9 = tpu.matmul %7, %8, %cst_7 {dimension_numbers = #tpu.dot_dimension_numbers<[1], [0], [0], [1], [0, 0, 1, 1], [], []>} : vector<128x128xbf16>, vector<128x128xbf16>, vector<128x128xf32> -> vector<128x128xf32>
    %c0_8 = arith.constant 0 : index
    %c0_9 = arith.constant 0 : index
    %10 = vector.load %arg5[%c0_8, %c0_9] : memref<1x128xf32, #tpu.memory_space<vmem>>, vector<1x128xf32>
    %11 = vector.broadcast %10 : vector<1x128xf32> to vector<128x128xf32>
    %12 = arith.addf %9, %11 : vector<128x128xf32>
    %13 = math.tanh %12 : vector<128x128xf32>
    %14 = arith.truncf %13 : vector<128x128xf32> to vector<128x128xbf16>
    %c0_10 = arith.constant 0 : index
    %c0_11 = arith.constant 0 : index
    %15 = vector.load %arg6[%c0_10, %c0_11] : memref<128x128xbf16, #tpu.memory_space<vmem>>, vector<128x128xbf16>
    %cst_12 = arith.constant dense<0.000000e+00> : vector<128x128xf32>
    %16 = tpu.matmul %14, %15, %cst_12 {dimension_numbers = #tpu.dot_dimension_numbers<[1], [0], [0], [1], [0, 0, 1, 1], [], []>} : vector<128x128xbf16>, vector<128x128xbf16>, vector<128x128xf32> -> vector<128x128xf32>
    %c0_13 = arith.constant 0 : index
    %c0_14 = arith.constant 0 : index
    %17 = vector.load %arg7[%c0_13, %c0_14] : memref<1x128xf32, #tpu.memory_space<vmem>>, vector<1x128xf32>
    %18 = vector.broadcast %17 : vector<1x128xf32> to vector<128x128xf32>
    %19 = arith.addf %16, %18 : vector<128x128xf32>
    %c0_15 = arith.constant 0 : index
    %c0_16 = arith.constant 0 : index
    %20 = vector.load %arg8[%c0_15, %c0_16] : memref<128x128xf32, #tpu.memory_space<vmem>>, vector<128x128xf32>
    tpu.vector_store %arg8[%c0_15, %c0_16], %19 {strides = array<i32>} : memref<128x128xf32, #tpu.memory_space<vmem>>, vector<128x128xf32>,
    return
  }
  func.func @transform_0(%arg0: i32) -> (i32, i32) {
    %c0_i32 = arith.constant 0 : i32
    %c0_i32_0 = arith.constant 0 : i32
    return %arg0, %c0_i32 : i32, i32
  }
  func.func @transform_1(%arg0: i32) -> (i32, i32) {
    %c0_i32 = arith.constant 0 : i32
    %c0_i32_0 = arith.constant 0 : i32
    %c0_i32_1 = arith.constant 0 : i32
    return %c0_i32, %c0_i32_0 : i32, i32
  }
  func.func @transform_2(%arg0: i32) -> (i32, i32) {
    %c0_i32 = arith.constant 0 : i32
    %c0_i32_0 = arith.constant 0 : i32
    %c0_i32_1 = arith.constant 0 : i32
    return %c0_i32, %c0_i32_0 : i32, i32
  }
  func.func @transform_3(%arg0: i32) -> (i32, i32) {
    %c0_i32 = arith.constant 0 : i32
    %c0_i32_0 = arith.constant 0 : i32
    %c0_i32_1 = arith.constant 0 : i32
    return %c0_i32, %c0_i32_0 : i32, i32
  }
  func.func @transform_4(%arg0: i32) -> (i32, i32) {
    %c0_i32 = arith.constant 0 : i32
    %c0_i32_0 = arith.constant 0 : i32
    %c0_i32_1 = arith.constant 0 : i32
    return %c0_i32, %c0_i32_0 : i32, i32
  }
  func.func @transform_5(%arg0: i32) -> (i32, i32) {
    %c0_i32 = arith.constant 0 : i32
    %c0_i32_0 = arith.constant 0 : i32
    %c0_i32_1 = arith.constant 0 : i32
    return %c0_i32, %c0_i32_0 : i32, i32
  }
  func.func @transform_6(%arg0: i32) -> (i32, i32) {
    %c0_i32 = arith.constant 0 : i32
    %c0_i32_0 = arith.constant 0 : i32
    %c0_i32_1 = arith.constant 0 : i32
    return %c0_i32, %c0_i32_0 : i32, i32
  }
  func.func @transform_7(%arg0: i32) -> (i32, i32) {
    %c0_i32 = arith.constant 0 : i32
    %c0_i32_0 = arith.constant 0 : i32
    return %arg0, %c0_i32 : i32, i32
  }
}

</mosaic_0001>

<llo_original>
// kernel: mlp_forward.1
$region0: #{mlp_forward.1}
  #allocation0 [shape = 'u32[]', space=smem, size = 0x4, offset = 0x4, fixed_abs, tag = 'smem constant byte address 0x4 - core index']
  #allocation1 [shape = 'u32[72,128]{1,0:T(1,128)}', space=vmem, size = 0x9000, scoped, tag = 'internal scratch']
  %s0 = inlined_call_operand.vmem [shape: bf16[256,16], index: 0, kind: input, shape index: {}]
  %s1 = inlined_call_operand.vmem [shape: bf16[16,128], index: 1, kind: input, shape index: {}]
  %s2 = inlined_call_operand.vmem [shape: f32[1,128], index: 2, kind: input, shape index: {}]
  %s3 = inlined_call_operand.vmem [shape: bf16[128,128], index: 3, kind: input, shape index: {}]
  %s4 = inlined_call_operand.vmem [shape: f32[1,128], index: 4, kind: input, shape index: {}]
  %s5 = inlined_call_operand.vmem [shape: bf16[128,128], index: 5, kind: input, shape index: {}]
  %s6 = inlined_call_operand.vmem [shape: f32[1,128], index: 6, kind: input, shape index: {}]
  %s7 = inlined_call_operand.vmem [shape: f32[256,128], index: 7, kind: output, shape index: {}]
  %s8 = sld [smem:[#allocation0]]
  $region61: #{mlp_forward.1} parent=0
    _
  %s10 = ssub.s32 1, %s8
  %s11 = scalar_select 0, %s10, %s8
  loop: start=0, step=1, limit=4
  $region2: #{mlp_forward.1} parent=0 // loop_pre_header
    _
  $region3: #{mlp_forward.1} parent=0 // loop_header
    %s13 = sphi 0, %s17
    %p14 = scmp.ge.s32.totalorder %s13, 4
    %s23 = sphi 0, %s25
    %s26 = sphi 0, %s23
    %s27 = sphi 0, %s26
    %s43 = sphi 0, %s27
    %s47 = sphi 0, %s47
    %s49 = sphi 0, %s47
    %s50 = sphi 0, %s49
    %s64 = sphi 0, %s50
    %s68 = sphi 0, %s68
    %s70 = sphi 0, %s68
    %s71 = sphi 0, %s70
    %s85 = sphi 0, %s71
    %s89 = sphi 0, %s89
    %s91 = sphi 0, %s89
    %s92 = sphi 0, %s91
    %s106 = sphi 0, %s92
    %s110 = sphi 0, %s110
    %s112 = sphi 0, %s110
    %s113 = sphi 0, %s112
    %s127 = sphi 0, %s113
    %s131 = sphi 0, %s131
    %s133 = sphi 0, %s131
    %s134 = sphi 0, %s133
    %s148 = sphi 0, %s134
    %s152 = sphi 0, %s152
    %s154 = sphi 0, %s152
    %s155 = sphi 0, %s154
    %s169 = sphi 0, %s155
    %s175 = sphi 0, %s177
    %s178 = sphi 0, %s175
    %s179 = sphi 0, %s178
    %s195 = sphi 0, %s179
  $region4: #{mlp_forward.1} parent=0 // loop_header_branch
    %16 = sbr.rel (%p14) target = $region8
  $region5: #{mlp_forward.1} parent=0 // loop_body
    %s18 = ssub.s32 %s13, 1
    %s19 = ssub.s32 %s13, 2
    %s20 = sadd.s32 %s13, 1
    %s21 = ssub.s32 %s13, %s20
    %p22 = scmp.eq.s32.totalorder %s21, 0
    %s24 = sadd.s32 %s23, 1
    %s25 = scalar_select %p22, %s23, %s24
    %p28 = pneg %p22
    %p29 = scmp.eq.s32.totalorder %s13, 1
    %p30 = por %p28, %p29
    %p31 = scmp.ne.s32.totalorder %s23, %s26
    %p32 = scmp.eq.s32.totalorder %s13, 0
    %p33 = por %p31, %p32
    %p34 = scmp.ne.s32.totalorder %s23, %s26
    %p35 = scmp.eq.s32.totalorder %s18, 1
    %p36 = por %p34, %p35
    %p37 = scmp.ne.s32.totalorder %s26, %s27
    %p38 = scmp.eq.s32.totalorder %s18, 0
    %p39 = por %p37, %p38
    %p40 = scmp.ne.s32.totalorder %s26, %s27
    %p41 = scmp.eq.s32.totalorder %s19, 1
    %p42 = por %p40, %p41
    %p44 = scmp.ne.s32.totalorder %s27, %s43
    %p45 = scmp.eq.s32.totalorder %s19, 0
    %p46 = por %p44, %p45
    %s48 = sadd.s32 %s47, 1
    %p51 = scmp.eq.s32.totalorder %s13, 1
    %p52 = scmp.ne.s32.totalorder %s47, %s49
    %p53 = scmp.eq.s32.totalorder %s13, 0
    %p54 = por %p52, %p53
    %p55 = scmp.ne.s32.totalorder %s47, %s49
    %p56 = scmp.eq.s32.totalorder %s18, 1
    %p57 = por %p55, %p56
    %p58 = scmp.ne.s32.totalorder %s49, %s50
    %p59 = scmp.eq.s32.totalorder %s18, 0
    %p60 = por %p58, %p59
    %p61 = scmp.ne.s32.totalorder %s49, %s50
    %p62 = scmp.eq.s32.totalorder %s19, 1
    %p63 = por %p61, %p62
    %p65 = scmp.ne.s32.totalorder %s50, %s64
    %p66 = scmp.eq.s32.totalorder %s19, 0
    %p67 = por %p65, %p66
    %s69 = sadd.s32 %s68, 1
    %p72 = scmp.eq.s32.totalorder %s13, 1
    %p73 = scmp.ne.s32.totalorder %s68, %s70
    %p74 = scmp.eq.s32.totalorder %s13, 0
    %p75 = por %p73, %p74
    %p76 = scmp.ne.s32.totalorder %s68, %s70
    %p77 = scmp.eq.s32.totalorder %s18, 1
    %p78 = por %p76, %p77
    %p79 = scmp.ne.s32.totalorder %s70, %s71
    %p80 = scmp.eq.s32.totalorder %s18, 0
    %p81 = por %p79, %p80
    %p82 = scmp.ne.s32.totalorder %s70, %s71
    %p83 = scmp.eq.s32.totalorder %s19, 1
    %p84 = por %p82, %p83
    %p86 = scmp.ne.s32.totalorder %s71, %s85
    %p87 = scmp.eq.s32.totalorder %s19, 0
    %p88 = por %p86, %p87
    %s90 = sadd.s32 %s89, 1
    %p93 = scmp.eq.s32.totalorder %s13, 1
    %p94 = scmp.ne.s32.totalorder %s89, %s91
    %p95 = scmp.eq.s32.totalorder %s13, 0
    %p96 = por %p94, %p95
    %p97 = scmp.ne.s32.totalorder %s89, %s91
    %p98 = scmp.eq.s32.totalorder %s18, 1
    %p99 = por %p97, %p98
    %p100 = scmp.ne.s32.totalorder %s91, %s92
    %p101 = scmp.eq.s32.totalorder %s18, 0
    %p102 = por %p100, %p101
    %p103 = scmp.ne.s32.totalorder %s91, %s92
    %p104 = scmp.eq.s32.totalorder %s19, 1
    %p105 = por %p103, %p104
    %p107 = scmp.ne.s32.totalorder %s92, %s106
    %p108 = scmp.eq.s32.totalorder %s19, 0
    %p109 = por %p107, %p108
    %s111 = sadd.s32 %s110, 1
    %p114 = scmp.eq.s32.totalorder %s13, 1
    %p115 = scmp.ne.s32.totalorder %s110, %s112
    %p116 = scmp.eq.s32.totalorder %s13, 0
    %p117 = por %p115, %p116
    %p118 = scmp.ne.s32.totalorder %s110, %s112
    %p119 = scmp.eq.s32.totalorder %s18, 1
    %p120 = por %p118, %p119
    %p121 = scmp.ne.s32.totalorder %s112, %s113
    %p122 = scmp.eq.s32.totalorder %s18, 0
    %p123 = por %p121, %p122
    %p124 = scmp.ne.s32.totalorder %s112, %s113
    %p125 = scmp.eq.s32.totalorder %s19, 1
    %p126 = por %p124, %p125
    %p128 = scmp.ne.s32.totalorder %s113, %s127
    %p129 = scmp.eq.s32.totalorder %s19, 0
    %p130 = por %p128, %p129
    %s132 = sadd.s32 %s131, 1
    %p135 = scmp.eq.s32.totalorder %s13, 1
    %p136 = scmp.ne.s32.totalorder %s131, %s133
    %p137 = scmp.eq.s32.totalorder %s13, 0
    %p138 = por %p136, %p137
    %p139 = scmp.ne.s32.totalorder %s131, %s133
    %p140 = scmp.eq.s32.totalorder %s18, 1
    %p141 = por %p139, %p140
    %p142 = scmp.ne.s32.totalorder %s133, %s134
    %p143 = scmp.eq.s32.totalorder %s18, 0
    %p144 = por %p142, %p143
    %p145 = scmp.ne.s32.totalorder %s133, %s134
    %p146 = scmp.eq.s32.totalorder %s19, 1
    %p147 = por %p145, %p146
    %p149 = scmp.ne.s32.totalorder %s134, %s148
    %p150 = scmp.eq.s32.totalorder %s19, 0
    %p151 = por %p149, %p150
    %s153 = sadd.s32 %s152, 1
    %p156 = scmp.eq.s32.totalorder %s13, 1
    %p157 = scmp.ne.s32.totalorder %s152, %s154
    %p158 = scmp.eq.s32.totalorder %s13, 0
    %p159 = por %p157, %p158
    %p160 = scmp.ne.s32.totalorder %s152, %s154
    %p161 = scmp.eq.s32.totalorder %s18, 1
    %p162 = por %p160, %p161
    %p163 = scmp.ne.s32.totalorder %s154, %s155
    %p164 = scmp.eq.s32.totalorder %s18, 0
    %p165 = por %p163, %p164
    %p166 = scmp.ne.s32.totalorder %s154, %s155
    %p167 = scmp.eq.s32.totalorder %s19, 1
    %p168 = por %p166, %p167
    %p170 = scmp.ne.s32.totalorder %s155, %s169
    %p171 = scmp.eq.s32.totalorder %s19, 0
    %p172 = por %p170, %p171
    %s173 = ssub.s32 %s13, %s20
    %p174 = scmp.eq.s32.totalorder %s173, 0
    %s176 = sadd.s32 %s175, 1
    %s177 = scalar_select %p174, %s175, %s176
    %p180 = pneg %p174
    %p181 = scmp.eq.s32.totalorder %s13, 1
    %p182 = por %p180, %p181
    %p183 = scmp.ne.s32.totalorder %s175, %s178
    %p184 = scmp.eq.s32.totalorder %s13, 0
    %p185 = por %p183, %p184
    %p186 = scmp.ne.s32.totalorder %s175, %s178
    %p187 = scmp.eq.s32.totalorder %s18, 1
    %p188 = por %p186, %p187
    %p189 = scmp.ne.s32.totalorder %s178, %s179
    %p190 = scmp.eq.s32.totalorder %s18, 0
    %p191 = por %p189, %p190
    %p192 = scmp.ne.s32.totalorder %s178, %s179
    %p193 = scmp.eq.s32.totalorder %s19, 1
    %p194 = por %p192, %p193
    %p196 = scmp.ne.s32.totalorder %s179, %s195
    %p197 = scmp.eq.s32.totalorder %s19, 0
    %p198 = por %p196, %p197
    %p199 = scmp.le.s32.totalorder 1, %s13
    %p200 = scmp.lt.s32.totalorder %s13, 3
    %p201 = pnand %p199, %p200
    %p202 = pneg %p201
    // Predicated region
    $region9: #{mlp_forward.1} parent=5 // pred_check
      _
    $region10: #{mlp_forward.1} parent=5 // pred_check_branch
      %204 = sbr.rel (%p201) target = $region12
    $region11: #{mlp_forward.1} parent=5 // pred_region
      %s205 = ssub.s32 %s13, 1
      // Predicated region
      $region13: #{mlp_forward.1} parent=11 // pred_check
        %p206 = pneg %p60
      $region14: #{mlp_forward.1} parent=11 // pred_check_branch
        %208 = sbr.rel (%p206) target = $region16
      $region15: #{mlp_forward.1} parent=11 // pred_region
        _
      $region16: #{mlp_forward.1} parent=11 // pred_fallthru
        _
      // Predicated region
      $region17: #{mlp_forward.1} parent=11 // pred_check
        %p209 = pneg %p81
      $region18: #{mlp_forward.1} parent=11 // pred_check_branch
        %211 = sbr.rel (%p209) target = $region20
      $region19: #{mlp_forward.1} parent=11 // pred_region
        _
      $region20: #{mlp_forward.1} parent=11 // pred_fallthru
        _
      // Predicated region
      $region21: #{mlp_forward.1} parent=11 // pred_check
        %p212 = pneg %p102
      $region22: #{mlp_forward.1} parent=11 // pred_check_branch
        %214 = sbr.rel (%p212) target = $region24
      $region23: #{mlp_forward.1} parent=11 // pred_region
        _
      $region24: #{mlp_forward.1} parent=11 // pred_fallthru
        _
      // Predicated region
      $region25: #{mlp_forward.1} parent=11 // pred_check
        %p215 = pneg %p123
      $region26: #{mlp_forward.1} parent=11 // pred_check_branch
        %217 = sbr.rel (%p215) target = $region28
      $region27: #{mlp_forward.1} parent=11 // pred_region
        _
      $region28: #{mlp_forward.1} parent=11 // pred_fallthru
        _
      // Predicated region
      $region29: #{mlp_forward.1} parent=11 // pred_check
        %p218 = pneg %p144
      $region30: #{mlp_forward.1} parent=11 // pred_check_branch
        %220 = sbr.rel (%p218) target = $region32
      $region31: #{mlp_forward.1} parent=11 // pred_region
        _
      $region32: #{mlp_forward.1} parent=11 // pred_fallthru
        _
      // Predicated region
      $region33: #{mlp_forward.1} parent=11 // pred_check
        %p221 = pneg %p165
      $region34: #{mlp_forward.1} parent=11 // pred_check_branch
        %223 = sbr.rel (%p221) target = $region36
      $region35: #{mlp_forward.1} parent=11 // pred_region
        _
      $region36: #{mlp_forward.1} parent=11 // pred_fallthru
        _
    $region12: #{mlp_forward.1} parent=5 // pred_fallthru
      _
    %p224 = scmp.lt.s32.totalorder %s13, 2
    // Predicated region
    $region37: #{mlp_forward.1} parent=5 // pred_check
      %p225 = pneg %p224
    $region38: #{mlp_forward.1} parent=5 // pred_check_branch
      %227 = sbr.rel (%p225) target = $region40
    $region39: #{mlp_forward.1} parent=5 // pred_region
      // Predicated region
      $region41: #{mlp_forward.1} parent=39 // pred_check
        %p228 = pneg %p33
      $region42: #{mlp_forward.1} parent=39 // pred_check_branch
        %230 = sbr.rel (%p228) target = $region44
      $region43: #{mlp_forward.1} parent=39 // pred_region
        %s231 = smul.u32 16, %s13
        %p232 = scmp.lt.s32.totalorder %s231, 31
        %s233 = scalar_select %p232, %s231, 31
        %s234 = smul.addr %s233, 4
        %s235 = scalar_lea.vmem %s0, %s234
        %s236 = smul.u32 16, %s13
      $region44: #{mlp_forward.1} parent=39 // pred_fallthru
        _
    $region40: #{mlp_forward.1} parent=5 // pred_fallthru
      _
    %p237 = scmp.le.s32.totalorder 1, %s13
    %p238 = scmp.lt.s32.totalorder %s13, 3
    %p239 = pnand %p237, %p238
    %p240 = pneg %p239
    // Predicated region
    $region45: #{mlp_forward.1} parent=5 // pred_check
      _
    $region46: #{mlp_forward.1} parent=5 // pred_check_branch
      %242 = sbr.rel (%p239) target = $region48
    $region47: #{mlp_forward.1} parent=5 // pred_region
      %s243 = ssub.s32 %s13, 1
      %s244 = smul.u32 16, %s18
      %p245 = scmp.lt.s32.totalorder %s244, 31
      %s246 = scalar_select %p245, %s244, 31
      %s247 = smul.addr %s246, 4
      %s248 = scalar_lea.vmem %s0, %s247
      %p249 = pneg %p39
      %p250 = pneg %p36
      %p251 = pneg %p60
      %p252 = pneg %p57
      %p253 = pneg %p81
      %p254 = pneg %p78
      %p255 = pneg %p102
      %p256 = pneg %p99
      %p257 = pneg %p123
      %p258 = pneg %p120
      %p259 = pneg %p144
      %p260 = pneg %p141
      %p261 = pneg %p165
      %p262 = pneg %p162
      %p263 = pneg %p191
      %p264 = pneg %p188
      %s265 = smul.u32 16, %s18
      %p266 = scmp.lt.s32.totalorder %s265, 31
      %s267 = scalar_select %p266, %s265, 31
      %s268 = smul.addr %s267, 8
      %s269 = scalar_lea.vmem %s7, %s268
      %s270 = smul.u32 16, %s18
      %p271 = scmp.lt.s32.totalorder %s270, 31
      %s272 = scalar_select %p271, %s270, 31
      %s273 = smul.addr %s272, 4
      %s274 = scalar_lea.vmem %s0, %s273
      %s275 = smul.u32 16, %s18
      %s276 = smul.u32 16, %s18
      %p277 = scmp.lt.s32.totalorder %s276, 31
      %s278 = scalar_select %p277, %s276, 31
      %s279 = smul.addr %s278, 8
      %s280 = scalar_lea.vmem %s7, %s279
      %s281 = smul.u32 16, %s18
      %v283 = vld [vmem:[%s274] sm:$0xf]
      %v284 = vld [vmem:[%s274 + $0x4] sm:$0xf]
      %v285 = vld [vmem:[%s274 + $0x8] sm:$0xf]
      %v286 = vld [vmem:[%s274 + $0xc] sm:$0xf]
      %v287 = vld [vmem:[%s274 + $0x10] sm:$0xf]
      %v288 = vld [vmem:[%s274 + $0x14] sm:$0xf]
      %v289 = vld [vmem:[%s274 + $0x18] sm:$0xf]
      %v290 = vld [vmem:[%s274 + $0x1c] sm:$0xf]
      %v291 = vld [vmem:[%s274 + $0x20] sm:$0xf]
      %v292 = vld [vmem:[%s274 + $0x24] sm:$0xf]
      %v293 = vld [vmem:[%s274 + $0x28] sm:$0xf]
      %v294 = vld [vmem:[%s274 + $0x2c] sm:$0xf]
      %v295 = vld [vmem:[%s274 + $0x30] sm:$0xf]
      %v296 = vld [vmem:[%s274 + $0x34] sm:$0xf]
      %v297 = vld [vmem:[%s274 + $0x38] sm:$0xf]
      %v298 = vld [vmem:[%s274 + $0x3c] sm:$0xf]
      %v299 = vld [vmem:[%s1] sm:$0xf]
      %v300 = vld [vmem:[%s1 + $0x4] sm:$0xf]
      %v301 = vld [vmem:[%s2] sm:$0x1]
      %v303 = vperm.slane %v301, 0
      %v321 = vunpack.c.l.b16 %v283
      %v322 = vunpack.c.l.b16 %v284
      %v323 = vunpack.c.l.b16 %v285
      %v324 = vunpack.c.l.b16 %v286
      %v325 = vunpack.c.l.b16 %v287
      %v326 = vunpack.c.l.b16 %v288
      %v327 = vunpack.c.l.b16 %v289
      %v328 = vunpack.c.l.b16 %v290
      %v329 = vunpack.c.l.b16 %v291
      %v330 = vunpack.c.l.b16 %v292
      %v331 = vunpack.c.l.b16 %v293
      %v332 = vunpack.c.l.b16 %v294
      %v333 = vunpack.c.l.b16 %v295
      %v334 = vunpack.c.l.b16 %v296
      %v335 = vunpack.c.l.b16 %v297
      %v336 = vunpack.c.l.b16 %v298
      %v337 = vpack.c.b16 %v322, %v321
      %v338 = vpack.c.b16 %v324, %v323
      %v339 = vpack.c.b16 %v326, %v325
      %v340 = vpack.c.b16 %v328, %v327
      %v341 = vpack.c.b16 %v330, %v329
      %v342 = vpack.c.b16 %v332, %v331
      %v343 = vpack.c.b16 %v334, %v333
      %v344 = vpack.c.b16 %v336, %v335
      %v347 = vunpack.c.l.b16 %v299
      %v348 = vunpack.c.l.b16 %v300
      %v349 = vpack.c.b16 %v348, %v347
      %vm351 = vcmask 130048
      %v353 = vsel %vm351, %v337, 0
      %v356 = vsel %vm351, %v338, 0
      %v359 = vsel %vm351, %v339, 0
      %v362 = vsel %vm351, %v340, 0
      %v365 = vsel %vm351, %v341, 0
      %v368 = vsel %vm351, %v342, 0
      %v371 = vsel %vm351, %v343, 0
      %v374 = vsel %vm351, %v344, 0
      %376 = vmatpush.bf16.msra.mxu0 0
      %377 = vmatpush.bf16.msra.mxu0 0
      %378 = vmatpush.bf16.msra.mxu0 0
      %379 = vmatpush.bf16.msra.mxu0 0
      %380 = vmatpush.bf16.msra.mxu0 0
      %381 = vmatpush.bf16.msra.mxu0 0
      %382 = vmatpush.bf16.msra.mxu0 0
      %383 = vmatpush.bf16.msra.mxu0 %v349
      %384 = vmatmul.bf16.gmra.mxu0 %v353
      %v385 = vpop.f32.mrf.mxu0
      %v386 = vadd.f32 %v303, %v385
      %v387 = vpop.f32.mrf.mxu0
      %v388 = vadd.f32 %v303, %v387
      %389 = vmatmul.bf16.gmra.mxu0 %v356
      %v390 = vpop.f32.mrf.mxu0
      %v391 = vadd.f32 %v303, %v390
      %v392 = vpop.f32.mrf.mxu0
      %v393 = vadd.f32 %v303, %v392
      %394 = vmatmul.bf16.gmra.mxu0 %v359
      %v395 = vpop.f32.mrf.mxu0
      %v396 = vadd.f32 %v303, %v395
      %v397 = vpop.f32.mrf.mxu0
      %v398 = vadd.f32 %v303, %v397
      %399 = vmatmul.bf16.gmra.mxu0 %v362
      %v400 = vpop.f32.mrf.mxu0
      %v401 = vadd.f32 %v303, %v400
      %v402 = vpop.f32.mrf.mxu0
      %v403 = vadd.f32 %v303, %v402
      %404 = vmatmul.bf16.gmra.mxu0 %v365
      %v405 = vpop.f32.mrf.mxu0
      %v406 = vadd.f32 %v303, %v405
      %v407 = vpop.f32.mrf.mxu0
      %v408 = vadd.f32 %v303, %v407
      %409 = vmatmul.bf16.gmra.mxu0 %v368
      %v410 = vpop.f32.mrf.mxu0
      %v411 = vadd.f32 %v303, %v410
      %v412 = vpop.f32.mrf.mxu0
      %v413 = vadd.f32 %v303, %v412
      %414 = vmatmul.bf16.gmra.mxu0 %v371
      %v415 = vpop.f32.mrf.mxu0
      %v416 = vadd.f32 %v303, %v415
      %v417 = vpop.f32.mrf.mxu0
      %v418 = vadd.f32 %v303, %v417
      %419 = vmatmul.bf16.gmra.mxu0 %v374
      %v420 = vpop.f32.mrf.mxu0
      %v421 = vadd.f32 %v303, %v420
      %v422 = vpop.f32.mrf.mxu0
      %v423 = vadd.f32 %v303, %v422
      %424 = vdwg.mxu0
      %v425 = vtanh.pop %v386
      %v426 = vtanh.pop %v388
      %v427 = vtanh.pop %v391
      %v428 = vtanh.pop %v393
      %v429 = vtanh.pop %v396
      %v430 = vtanh.pop %v398
      %v431 = vtanh.pop %v401
      %v432 = vtanh.pop %v403
      %v433 = vtanh.pop %v406
      %v434 = vtanh.pop %v408
      %v435 = vtanh.pop %v411
      %v436 = vtanh.pop %v413
      %v437 = vtanh.pop %v416
      %v438 = vtanh.pop %v418
      %v439 = vtanh.pop %v421
      %v440 = vtanh.pop %v423
      %v441 = vpack.c.bf16 %v426, %v425
      %v442 = vpack.c.bf16 %v428, %v427
      %v443 = vpack.c.bf16 %v430, %v429
      %v444 = vpack.c.bf16 %v432, %v431
      %v445 = vpack.c.bf16 %v434, %v433
      %v446 = vpack.c.bf16 %v436, %v435
      %v447 = vpack.c.bf16 %v438, %v437
      %v448 = vpack.c.bf16 %v440, %v439
      %v449 = vld [vmem:[%s3] sm:$0xf]
      %v450 = vld [vmem:[%s3 + $0x4] sm:$0xf]
      %v451 = vld [vmem:[%s3 + $0x8] sm:$0xf]
      %v452 = vld [vmem:[%s3 + $0xc] sm:$0xf]
      %v453 = vld [vmem:[%s3 + $0x10] sm:$0xf]
      %v454 = vld [vmem:[%s3 + $0x14] sm:$0xf]
      %v455 = vld [vmem:[%s3 + $0x18] sm:$0xf]
      %v456 = vld [vmem:[%s3 + $0x1c] sm:$0xf]
      %v457 = vld [vmem:[%s3 + $0x20] sm:$0xf]
      %v458 = vld [vmem:[%s3 + $0x24] sm:$0xf]
      %v459 = vld [vmem:[%s3 + $0x28] sm:$0xf]
      %v460 = vld [vmem:[%s3 + $0x2c] sm:$0xf]
      %v461 = vld [vmem:[%s3 + $0x30] sm:$0xf]
      %v462 = vld [vmem:[%s3 + $0x34] sm:$0xf]
      %v463 = vld [vmem:[%s3 + $0x38] sm:$0xf]
      %v464 = vld [vmem:[%s3 + $0x3c] sm:$0xf]
      %v465 = vld [vmem:[%s4] sm:$0x1]
      %v467 = vperm.slane %v465, 0
      %v485 = vunpack.c.l.b16 %v449
      %v486 = vunpack.c.l.b16 %v450
      %v487 = vunpack.c.l.b16 %v451
      %v488 = vunpack.c.l.b16 %v452
      %v489 = vunpack.c.l.b16 %v453
      %v490 = vunpack.c.l.b16 %v454
      %v491 = vunpack.c.l.b16 %v455
      %v492 = vunpack.c.l.b16 %v456
      %v493 = vunpack.c.l.b16 %v457
      %v494 = vunpack.c.l.b16 %v458
      %v495 = vunpack.c.l.b16 %v459
      %v496 = vunpack.c.l.b16 %v460
      %v497 = vunpack.c.l.b16 %v461
      %v498 = vunpack.c.l.b16 %v462
      %v499 = vunpack.c.l.b16 %v463
      %v500 = vunpack.c.l.b16 %v464
      %v501 = vpack.c.b16 %v486, %v485
      %v502 = vpack.c.b16 %v488, %v487
      %v503 = vpack.c.b16 %v490, %v489
      %v504 = vpack.c.b16 %v492, %v491
      %v505 = vpack.c.b16 %v494, %v493
      %v506 = vpack.c.b16 %v496, %v495
      %v507 = vpack.c.b16 %v498, %v497
      %v508 = vpack.c.b16 %v500, %v499
      %517 = vmatpush.bf16.msra.mxu0 %v508
      %518 = vmatpush.bf16.msra.mxu0 %v507
      %519 = vmatpush.bf16.msra.mxu0 %v506
      %520 = vmatpush.bf16.msra.mxu0 %v505
      %521 = vmatpush.bf16.msra.mxu0 %v504
      %522 = vmatpush.bf16.msra.mxu0 %v503
      %523 = vmatpush.bf16.msra.mxu0 %v502
      %524 = vmatpush.bf16.msra.mxu0 %v501
      %525 = vmatmul.bf16.gmra.mxu0 %v441
      %v526 = vpop.f32.mrf.mxu0
      %v527 = vadd.f32 %v467, %v526
      %v528 = vpop.f32.mrf.mxu0
      %v529 = vadd.f32 %v467, %v528
      %530 = vmatmul.bf16.gmra.mxu0 %v442
      %v531 = vpop.f32.mrf.mxu0
      %v532 = vadd.f32 %v467, %v531
      %v533 = vpop.f32.mrf.mxu0
      %v534 = vadd.f32 %v467, %v533
      %535 = vmatmul.bf16.gmra.mxu0 %v443
      %v536 = vpop.f32.mrf.mxu0
      %v537 = vadd.f32 %v467, %v536
      %v538 = vpop.f32.mrf.mxu0
      %v539 = vadd.f32 %v467, %v538
      %540 = vmatmul.bf16.gmra.mxu0 %v444
      %v541 = vpop.f32.mrf.mxu0
      %v542 = vadd.f32 %v467, %v541
      %v543 = vpop.f32.mrf.mxu0
      %v544 = vadd.f32 %v467, %v543
      %545 = vmatmul.bf16.gmra.mxu0 %v445
      %v546 = vpop.f32.mrf.mxu0
      %v547 = vadd.f32 %v467, %v546
      %v548 = vpop.f32.mrf.mxu0
      %v549 = vadd.f32 %v467, %v548
      %550 = vmatmul.bf16.gmra.mxu0 %v446
      %v551 = vpop.f32.mrf.mxu0
      %v552 = vadd.f32 %v467, %v551
      %v553 = vpop.f32.mrf.mxu0
      %v554 = vadd.f32 %v467, %v553
      %555 = vmatmul.bf16.gmra.mxu0 %v447
      %v556 = vpop.f32.mrf.mxu0
      %v557 = vadd.f32 %v467, %v556
      %v558 = vpop.f32.mrf.mxu0
      %v559 = vadd.f32 %v467, %v558
      %560 = vmatmul.bf16.gmra.mxu0 %v448
      %v561 = vpop.f32.mrf.mxu0
      %v562 = vadd.f32 %v467, %v561
      %v563 = vpop.f32.mrf.mxu0
      %v564 = vadd.f32 %v467, %v563
      %565 = vdwg.mxu0
      %v566 = vtanh.pop %v527
      %v567 = vtanh.pop %v529
      %v568 = vtanh.pop %v532
      %v569 = vtanh.pop %v534
      %v570 = vtanh.pop %v537
      %v571 = vtanh.pop %v539
      %v572 = vtanh.pop %v542
      %v573 = vtanh.pop %v544
      %v574 = vtanh.pop %v547
      %v575 = vtanh.pop %v549
      %v576 = vtanh.pop %v552
      %v577 = vtanh.pop %v554
      %v578 = vtanh.pop %v557
      %v579 = vtanh.pop %v559
      %v580 = vtanh.pop %v562
      %v581 = vtanh.pop %v564
      %v582 = vpack.c.bf16 %v567, %v566
      %v583 = vpack.c.bf16 %v569, %v568
      %v584 = vpack.c.bf16 %v571, %v570
      %v585 = vpack.c.bf16 %v573, %v572
      %v586 = vpack.c.bf16 %v575, %v574
      %v587 = vpack.c.bf16 %v577, %v576
      %v588 = vpack.c.bf16 %v579, %v578
      %v589 = vpack.c.bf16 %v581, %v580
      %v590 = vld [vmem:[%s5] sm:$0xf]
      %v591 = vld [vmem:[%s5 + $0x4] sm:$0xf]
      %v592 = vld [vmem:[%s5 + $0x8] sm:$0xf]
      %v593 = vld [vmem:[%s5 + $0xc] sm:$0xf]
      %v594 = vld [vmem:[%s5 + $0x10] sm:$0xf]
      %v595 = vld [vmem:[%s5 + $0x14] sm:$0xf]
      %v596 = vld [vmem:[%s5 + $0x18] sm:$0xf]
      %v597 = vld [vmem:[%s5 + $0x1c] sm:$0xf]
      %v598 = vld [vmem:[%s5 + $0x20] sm:$0xf]
      %v599 = vld [vmem:[%s5 + $0x24] sm:$0xf]
      %v600 = vld [vmem:[%s5 + $0x28] sm:$0xf]
      %v601 = vld [vmem:[%s5 + $0x2c] sm:$0xf]
      %v602 = vld [vmem:[%s5 + $0x30] sm:$0xf]
      %v603 = vld [vmem:[%s5 + $0x34] sm:$0xf]
      %v604 = vld [vmem:[%s5 + $0x38] sm:$0xf]
      %v605 = vld [vmem:[%s5 + $0x3c] sm:$0xf]
      %v606 = vld [vmem:[%s6] sm:$0x1]
      %v608 = vperm.slane %v606, 0
      %v626 = vunpack.c.l.b16 %v590
      %v627 = vunpack.c.l.b16 %v591
      %v628 = vunpack.c.l.b16 %v592
      %v629 = vunpack.c.l.b16 %v593
      %v630 = vunpack.c.l.b16 %v594
      %v631 = vunpack.c.l.b16 %v595
      %v632 = vunpack.c.l.b16 %v596
      %v633 = vunpack.c.l.b16 %v597
      %v634 = vunpack.c.l.b16 %v598
      %v635 = vunpack.c.l.b16 %v599
      %v636 = vunpack.c.l.b16 %v600
      %v637 = vunpack.c.l.b16 %v601
      %v638 = vunpack.c.l.b16 %v602
      %v639 = vunpack.c.l.b16 %v603
      %v640 = vunpack.c.l.b16 %v604
      %v641 = vunpack.c.l.b16 %v605
      %v642 = vpack.c.b16 %v627, %v626
      %v643 = vpack.c.b16 %v629, %v628
      %v644 = vpack.c.b16 %v631, %v630
      %v645 = vpack.c.b16 %v633, %v632
      %v646 = vpack.c.b16 %v635, %v634
      %v647 = vpack.c.b16 %v637, %v636
      %v648 = vpack.c.b16 %v639, %v638
      %v649 = vpack.c.b16 %v641, %v640
      %658 = vmatpush.bf16.msra.mxu0 %v649
      %659 = vmatpush.bf16.msra.mxu0 %v648
      %660 = vmatpush.bf16.msra.mxu0 %v647
      %661 = vmatpush.bf16.msra.mxu0 %v646
      %662 = vmatpush.bf16.msra.mxu0 %v645
      %663 = vmatpush.bf16.msra.mxu0 %v644
      %664 = vmatpush.bf16.msra.mxu0 %v643
      %665 = vmatpush.bf16.msra.mxu0 %v642
      %666 = vmatmul.bf16.gmra.mxu0 %v582
      %v667 = vpop.f32.mrf.mxu0
      %v668 = vadd.f32 %v608, %v667
      %v669 = vpop.f32.mrf.mxu0
      %v670 = vadd.f32 %v608, %v669
      %671 = vmatmul.bf16.gmra.mxu0 %v583
      %v672 = vpop.f32.mrf.mxu0
      %v673 = vadd.f32 %v608, %v672
      %v674 = vpop.f32.mrf.mxu0
      %v675 = vadd.f32 %v608, %v674
      %676 = vmatmul.bf16.gmra.mxu0 %v584
      %v677 = vpop.f32.mrf.mxu0
      %v678 = vadd.f32 %v608, %v677
      %v679 = vpop.f32.mrf.mxu0
      %v680 = vadd.f32 %v608, %v679
      %681 = vmatmul.bf16.gmra.mxu0 %v585
      %v682 = vpop.f32.mrf.mxu0
      %v683 = vadd.f32 %v608, %v682
      %v684 = vpop.f32.mrf.mxu0
      %v685 = vadd.f32 %v608, %v684
      %686 = vmatmul.bf16.gmra.mxu0 %v586
      %v687 = vpop.f32.mrf.mxu0
      %v688 = vadd.f32 %v608, %v687
      %v689 = vpop.f32.mrf.mxu0
      %v690 = vadd.f32 %v608, %v689
      %691 = vmatmul.bf16.gmra.mxu0 %v587
      %v692 = vpop.f32.mrf.mxu0
      %v693 = vadd.f32 %v608, %v692
      %v694 = vpop.f32.mrf.mxu0
      %v695 = vadd.f32 %v608, %v694
      %696 = vmatmul.bf16.gmra.mxu0 %v588
      %v697 = vpop.f32.mrf.mxu0
      %v698 = vadd.f32 %v608, %v697
      %v699 = vpop.f32.mrf.mxu0
      %v700 = vadd.f32 %v608, %v699
      %701 = vmatmul.bf16.gmra.mxu0 %v589
      %v702 = vpop.f32.mrf.mxu0
      %v703 = vadd.f32 %v608, %v702
      %v704 = vpop.f32.mrf.mxu0
      %v705 = vadd.f32 %v608, %v704
      %706 = vdwg.mxu0
      %707 = vst [vmem:[%s280] sm:$0xff] %v668
      %708 = vst [vmem:[%s280 + $0x8] sm:$0xff] %v670
      %709 = vst [vmem:[%s280 + $0x10] sm:$0xff] %v673
      %710 = vst [vmem:[%s280 + $0x18] sm:$0xff] %v675
      %711 = vst [vmem:[%s280 + $0x20] sm:$0xff] %v678
      %712 = vst [vmem:[%s280 + $0x28] sm:$0xff] %v680
      %713 = vst [vmem:[%s280 + $0x30] sm:$0xff] %v683
      %714 = vst [vmem:[%s280 + $0x38] sm:$0xff] %v685
      %715 = vst [vmem:[%s280 + $0x40] sm:$0xff] %v688
      %716 = vst [vmem:[%s280 + $0x48] sm:$0xff] %v690
      %717 = vst [vmem:[%s280 + $0x50] sm:$0xff] %v693
      %718 = vst [vmem:[%s280 + $0x58] sm:$0xff] %v695
      %719 = vst [vmem:[%s280 + $0x60] sm:$0xff] %v698
      %720 = vst [vmem:[%s280 + $0x68] sm:$0xff] %v700
      %721 = vst [vmem:[%s280 + $0x70] sm:$0xff] %v703
      %722 = vst [vmem:[%s280 + $0x78] sm:$0xff] %v705
      %s723 = smul.u32 16, %s18
      %p724 = scmp.lt.s32.totalorder %s723, 31
      %s725 = scalar_select %p724, %s723, 31
      %s726 = smul.addr %s725, 8
      %s727 = scalar_lea.vmem %s7, %s726
      // Predicated region
      $region49: #{mlp_forward.1} parent=47 // pred_check
        %p728 = pneg %p188
      $region50: #{mlp_forward.1} parent=47 // pred_check_branch
        %730 = sbr.rel (%p728) target = $region52
      $region51: #{mlp_forward.1} parent=47 // pred_region
        %s731 = smul.u32 16, %s18
      $region52: #{mlp_forward.1} parent=47 // pred_fallthru
        _
    $region48: #{mlp_forward.1} parent=5 // pred_fallthru
      _
    %p732 = scmp.le.s32.totalorder 2, %s13
    // Predicated region
    $region53: #{mlp_forward.1} parent=5 // pred_check
      %p733 = pneg %p732
    $region54: #{mlp_forward.1} parent=5 // pred_check_branch
      %735 = sbr.rel (%p733) target = $region56
    $region55: #{mlp_forward.1} parent=5 // pred_region
      %s736 = ssub.s32 %s13, 2
      // Predicated region
      $region57: #{mlp_forward.1} parent=55 // pred_check
        %p737 = pneg %p194
      $region58: #{mlp_forward.1} parent=55 // pred_check_branch
        %739 = sbr.rel (%p737) target = $region60
      $region59: #{mlp_forward.1} parent=55 // pred_region
        %s740 = smul.u32 16, %s19
        %p741 = scmp.lt.s32.totalorder %s740, 31
        %s742 = scalar_select %p741, %s740, 31
        %s743 = smul.addr %s742, 8
        %s744 = scalar_lea.vmem %s7, %s743
      $region60: #{mlp_forward.1} parent=55 // pred_fallthru
        _
    $region56: #{mlp_forward.1} parent=5 // pred_fallthru
      _
  $region6: #{mlp_forward.1} parent=0 // loop_footer
    %s17 = sadd.s32 1, %s13
  $region7: #{mlp_forward.1} parent=0 // loop_footer_branch
    %12 = sbr.rel target = $region3
  $region8: #{mlp_forward.1} parent=0 // loop_exit
    _

</llo_original>
